<compile_context>
chip_gen: v7x
topology: tpu7x:2x2x1
jax: 0.10.0
libtpu: 0.0.40
codegen_flags: <defaults>
</compile_context>

<pallas_src>
import numpy as np
import jax
import jax.numpy as jnp
from jax import lax
from jax.experimental import pallas as pl
from jax.experimental.pallas import tpu as pltpu

_LANE = 128
_VMEM_LIMIT = 48 * 2**20  # < v7x 64 MiB physical; raises the default scoped limit elsewhere


def _sublane(dtype) -> int:
    # f32 -> 8, bf16 -> 16, int8/fp8 -> 32 (sub-32-bit dtypes pack along sublanes)
    return max(8, 32 // np.dtype(dtype).itemsize)


def _block_rows(rows: int, block_rows: int, sublane: int) -> int:
    """Pick a row-block size.

    * multiple of the dtype's sublane packing whenever the block is partial,
    * >= 2 blocks when the array is non-trivial so v7x's two TensorCores both
      get work along the "parallel" row axis (neutral on v5e/v6e),
    * whole array as one block only when it is tiny.
    """
    if rows > block_rows:
        return (block_rows // sublane) * sublane
    if rows >= 2 * sublane:  # split into >=2 blocks for megacore
        return max(((rows // 2) // sublane) * sublane, sublane)
    return rows              # tiny array: single full-extent block


def _time_block(T: int) -> int:
    for tb in (4, 2):
        if T % tb == 0:
            return tb
    return 1


# ----------------------------------------------------------------------------
# kernels
# ----------------------------------------------------------------------------
def _lif_step_kernel(tau: float):
    inv_tau = 1.0 / tau

    def kernel(x_ref, u_last_ref, spikes_ref, u_new_ref):
        u = u_last_ref[...] * inv_tau + x_ref[...]
        spk = (u >= 1.0).astype(u.dtype)
        spikes_ref[...] = spk.astype(spikes_ref.dtype)
        u_new_ref[...] = u * (1.0 - spk)          # exact u*(1-spikes) hard reset

    return kernel


def _lif_rollout_kernel(tau: float, tb: int):
    inv_tau = 1.0 / tau

    def kernel(x_ref, u0_ref, spikes_ref, u_ref):
        @pl.when(pl.program_id(1) == 0)
        def _():
            u_ref[...] = u0_ref[...]              # load initial membrane potential

        u = u_ref[...]
        for s in range(tb):                        # tb <= 4: static full unroll
            u = u * inv_tau + x_ref[s]
            spk = (u >= 1.0).astype(u.dtype)
            spikes_ref[s] = spk.astype(spikes_ref.dtype)
            u = u * (1.0 - spk)
        u_ref[...] = u                             # stays resident in VMEM across t

    return kernel


# ----------------------------------------------------------------------------
# plain-jnp helpers (tiny tails / sub-128-element arrays)
# ----------------------------------------------------------------------------
def _lif_step_jnp(x, u_last, tau, spike_dtype):
    u = u_last * (1.0 / tau) + x
    spk = (u >= 1.0).astype(u.dtype)
    return spk.astype(spike_dtype), u * (1.0 - spk)


def _lif_scan_jnp(xs_flat, u0_flat, tau, spike_dtype):
    inv_tau = 1.0 / tau

    def step(u, x):
        u = u * inv_tau + x
        spk = (u >= 1.0).astype(u.dtype)
        return u * (1.0 - spk), spk.astype(spike_dtype)

    u_final, spikes = lax.scan(step, u0_flat, xs_flat)
    return spikes, u_final


# ----------------------------------------------------------------------------
# entry points
# ----------------------------------------------------------------------------
def lif_forward(inputs: jax.Array, u_last: jax.Array, tau: float = 2.0,
                block_rows: int = 8192, spike_dtype=None):
    """One LIF step. Returns (spikes, u_last_new). Purely elementwise."""
    orig_shape = inputs.shape
    dtype = inputs.dtype
    spike_dtype = dtype if spike_dtype is None else np.dtype(spike_dtype)
    n = inputs.size
    x_flat = inputs.reshape(-1)
    u_flat = u_last.reshape(-1)
    n_main = (n // _LANE) * _LANE

    if n_main == 0:  # sub-128-element array: not worth launching a kernel
        s, u = _lif_step_jnp(x_flat, u_flat, tau, spike_dtype)
        return s.reshape(orig_shape), u.reshape(orig_shape)

    rows = n_main // _LANE
    x2d = x_flat[:n_main].reshape(rows, _LANE)   # free bitcast when n_main == n
    u2d = u_flat[:n_main].reshape(rows, _LANE)

    br = _block_rows(rows, block_rows, _sublane(dtype))
    grid = (pl.cdiv(rows, br),)                  # partial last tile handled by masked stores
    spec = pl.BlockSpec((br, _LANE), lambda i: (i, 0))

    item = np.dtype(dtype).itemsize
    sitem = np.dtype(spike_dtype).itemsize
    cost = pl.CostEstimate(flops=5 * n_main, transcendentals=0,
                           bytes_accessed=n_main * (3 * item + sitem))

    spikes2d, u_new2d = pl.pallas_call(
        _lif_step_kernel(tau),
        out_shape=(
            jax.ShapeDtypeStruct((rows, _LANE), spike_dtype),
            jax.ShapeDtypeStruct((rows, _LANE), dtype),
        ),
        grid_spec=pltpu.PrefetchScalarGridSpec(
            num_scalar_prefetch=0,
            grid=grid,
            in_specs=[spec, spec],
            out_specs=(spec, spec),
        ),
        input_output_aliases={1: 1},             # u_last buffer -> u_new (state overwrite)
        compiler_params=pltpu.CompilerParams(
            dimension_semantics=("parallel",),
            vmem_limit_bytes=_VMEM_LIMIT,
        ),
        cost_estimate=cost,
    )(x2d, u2d)

    spikes_flat = spikes2d.reshape(-1)
    u_new_flat = u_new2d.reshape(-1)
    if n_main < n:  # <128-element tail in plain jnp (no pad/slice round-trip)
        s_tail, u_tail = _lif_step_jnp(x_flat[n_main:], u_flat[n_main:], tau, spike_dtype)
        spikes_flat = jnp.concatenate([spikes_flat, s_tail])
        u_new_flat = jnp.concatenate([u_new_flat, u_tail])
    return spikes_flat.reshape(orig_shape), u_new_flat.reshape(orig_shape)


def lif_rollout(xs: jax.Array, u0: jax.Array, tau: float = 2.0,
                block_rows: int = 2048, spike_dtype=None):
    """Fused multi-step LIF rollout.

    xs: [T, *shape] input per time step; u0: [*shape] initial membrane potential.
    Returns (spikes [T, *shape], u_final [*shape]). The membrane potential is
    carried in VMEM across the time grid axis; Tb consecutive time steps are
    processed per grid step to amortize the fixed per-step overhead.
    """
    T = xs.shape[0]
    orig_shape = xs.shape[1:]
    dtype = xs.dtype
    spike_dtype = dtype if spike_dtype is None else np.dtype(spike_dtype)
    n = u0.size
    xs_flat = xs.reshape(T, -1)
    u0_flat = u0.reshape(-1)
    n_main = (n // _LANE) * _LANE

    if n_main == 0:  # sub-128-element state: plain jnp scan
        s, u = _lif_scan_jnp(xs_flat, u0_flat, tau, spike_dtype)
        return s.reshape((T,) + orig_shape), u.reshape(orig_shape)

    rows = n_main // _LANE
    x3d = xs_flat[:, :n_main].reshape(T, rows, _LANE)
    u2d = u0_flat[:n_main].reshape(rows, _LANE)

    tb = _time_block(T)
    br = _block_rows(rows, block_rows, _sublane(dtype))
    grid = (pl.cdiv(rows, br), T // tb)          # row blocks parallel; time carried in VMEM

    item = np.dtype(dtype).itemsize
    sitem = np.dtype(spike_dtype).itemsize
    cost = pl.CostEstimate(flops=5 * n_main * T, transcendentals=0,
                           bytes_accessed=n_main * (T * item + 2 * item + T * sitem))

    spikes3d, u_final2d = pl.pallas_call(
        _lif_rollout_kernel(tau, tb),
        out_shape=(
            jax.ShapeDtypeStruct((T, rows, _LANE), spike_dtype),
            jax.ShapeDtypeStruct((rows, _LANE), dtype),
        ),
        grid_spec=pltpu.PrefetchScalarGridSpec(
            num_scalar_prefetch=0,
            grid=grid,
            in_specs=[
                pl.BlockSpec((tb, br, _LANE), lambda i, t: (t, i, 0)),  # x[t*tb:(t+1)*tb]
                pl.BlockSpec((br, _LANE), lambda i, t: (i, 0)),         # u0 (fetched once per i)
            ],
            out_specs=(
                pl.BlockSpec((tb, br, _LANE), lambda i, t: (t, i, 0)),  # spikes
                pl.BlockSpec((br, _LANE), lambda i, t: (i, 0)),         # u carry / final
            ),
        ),
        input_output_aliases={1: 1},             # u0 buffer -> u_final
        compiler_params=pltpu.CompilerParams(
            dimension_semantics=("parallel", "arbitrary"),
            vmem_limit_bytes=_VMEM_LIMIT,
        ),
        cost_estimate=cost,
    )(x3d, u2d)

    spikes_flat = spikes3d.reshape(T, -1)
    u_final_flat = u_final2d.reshape(-1)
    if n_main < n:  # <128-element tail in plain jnp
        s_tail, u_tail = _lif_scan_jnp(xs_flat[:, n_main:], u0_flat[n_main:], tau, spike_dtype)
        spikes_flat = jnp.concatenate([spikes_flat, s_tail], axis=1)
        u_final_flat = jnp.concatenate([u_final_flat, u_tail])
    return spikes_flat.reshape((T,) + orig_shape), u_final_flat.reshape(orig_shape)


def lif_reference(inputs, u_last, tau=2.0):
    u = u_last / tau + inputs
    spikes = (u - 1.0 >= 0.0).astype(inputs.dtype)
    u_new = u * (1.0 - spikes)
    return spikes, u_new


if __name__ == "__main__":
    key = jax.random.PRNGKey(0)
    B, C, H, W = 2, 4, 16, 16   # NCHW conv-style activations
    T = 8
    tau = 2.0

    kx, kt, ktail = jax.random.split(key, 3)
    x = jax.random.normal(kx, (B, C, H, W), dtype=jnp.float32) * 2.0
    xs = jax.random.normal(kt, (T, B, C, H, W), dtype=jnp.float32) * 2.0

    # --- single-step kernel, called twice to mimic the stateful module ---
    u0 = jnp.zeros_like(x)
    spikes1, u1 = lif_forward(x, u0, tau)
    spikes2, u2 = lif_forward(x, u1, tau)
    jax.block_until_ready((spikes1, u1, spikes2, u2))

    ref_s1, ref_u1 = lif_reference(x, u0, tau)
    ref_s2, ref_u2 = lif_reference(x, ref_u1, tau)
    assert jnp.array_equal(spikes1, ref_s1), "spikes step 1 mismatch"
    assert jnp.allclose(u1, ref_u1, atol=1e-6), "u_last step 1 mismatch"
    assert jnp.array_equal(spikes2, ref_s2), "spikes step 2 mismatch"
    assert jnp.allclose(u2, ref_u2, atol=1e-6), "u_last step 2 mismatch"

    # --- fused multi-step rollout (membrane potential resident in VMEM) ---
    u0r = jnp.zeros((B, C, H, W), dtype=jnp.float32)
    spikes_seq, u_final = lif_rollout(xs, u0r, tau)
    jax.block_until_ready((spikes_seq, u_final))

    u_ref = u0r
    for t in range(T):
        s_ref, u_ref = lif_reference(xs[t], u_ref, tau)
        assert jnp.array_equal(spikes_seq[t], s_ref), f"rollout spikes mismatch at t={t}"
    assert jnp.allclose(u_final, u_ref, atol=1e-6), "rollout final u mismatch"

    # --- non-multiple-of-128 tail path (kernel on aligned prefix, jnp tail) ---
    xt = jax.random.normal(ktail, (3, 50), dtype=jnp.float32) * 2.0
    ut0 = jnp.zeros_like(xt)
    st, ut = lif_forward(xt, ut0, tau)
    jax.block_until_ready((st, ut))
    ref_st, ref_ut = lif_reference(xt, ut0, tau)
    assert jnp.array_equal(st, ref_st), "tail spikes mismatch"
    assert jnp.allclose(ut, ref_ut, atol=1e-6), "tail u_last mismatch"

    print("KERNEL_OK")
</pallas_src>

<mosaic_0001>
module attributes {stable_mosaic.version = 11 : i64} {
  func.func @kernel(%arg0: i32, %arg1: memref<8x128xf32, #tpu.memory_space<vmem>>, %arg2: memref<8x128xf32, #tpu.memory_space<vmem>>, %arg3: memref<8x128xf32, #tpu.memory_space<vmem>>, %arg4: memref<8x128xf32, #tpu.memory_space<vmem>>) attributes {dimension_semantics = [#tpu.dimension_semantics<parallel>], iteration_bounds = array<i64: 2>, scalar_prefetch = 0 : i64, scratch_operands = 0 : i64, tpu.core_type = #tpu.core_type<tc>, window_params = [{transform_indices = @transform_0, window_bounds = array<i64: 8, 128>}, {transform_indices = @transform_1, window_bounds = array<i64: 8, 128>}, {transform_indices = @transform_2, window_bounds = array<i64: 8, 128>}, {transform_indices = @transform_3, window_bounds = array<i64: 8, 128>}]} {
    %c0 = arith.constant 0 : index
    %c0_0 = arith.constant 0 : index
    %0 = vector.load %arg2[%c0, %c0_0] : memref<8x128xf32, #tpu.memory_space<vmem>>, vector<8x128xf32>
    %cst = arith.constant 5.000000e-01 : f32
    %1 = vector.broadcast %cst : f32 to vector<8x128xf32>
    %2 = arith.mulf %0, %1 : vector<8x128xf32>
    %c0_1 = arith.constant 0 : index
    %c0_2 = arith.constant 0 : index
    %3 = vector.load %arg1[%c0_1, %c0_2] : memref<8x128xf32, #tpu.memory_space<vmem>>, vector<8x128xf32>
    %4 = arith.addf %2, %3 : vector<8x128xf32>
    %cst_3 = arith.constant 1.000000e+00 : f32
    %5 = vector.broadcast %cst_3 : f32 to vector<8x128xf32>
    %6 = arith.cmpf oge, %4, %5 : vector<8x128xf32>
    %7 = arith.extui %6 : vector<8x128xi1> to vector<8x128xi32>
    %8 = arith.sitofp %7 : vector<8x128xi32> to vector<8x128xf32>
    %c0_4 = arith.constant 0 : index
    %c0_5 = arith.constant 0 : index
    %9 = vector.load %arg3[%c0_4, %c0_5] : memref<8x128xf32, #tpu.memory_space<vmem>>, vector<8x128xf32>
    tpu.vector_store %arg3[%c0_4, %c0_5], %8 {strides = array<i32>} : memref<8x128xf32, #tpu.memory_space<vmem>>, vector<8x128xf32>,
    %cst_6 = arith.constant 1.000000e+00 : f32
    %10 = vector.broadcast %cst_6 : f32 to vector<8x128xf32>
    %11 = arith.subf %10, %8 : vector<8x128xf32>
    %12 = arith.mulf %4, %11 : vector<8x128xf32>
    %c0_7 = arith.constant 0 : index
    %c0_8 = arith.constant 0 : index
    %13 = vector.load %arg4[%c0_7, %c0_8] : memref<8x128xf32, #tpu.memory_space<vmem>>, vector<8x128xf32>
    tpu.vector_store %arg4[%c0_7, %c0_8], %12 {strides = array<i32>} : memref<8x128xf32, #tpu.memory_space<vmem>>, vector<8x128xf32>,
    return
  }
  func.func @transform_0(%arg0: i32) -> (i32, i32) {
    %c0_i32 = arith.constant 0 : i32
    %c0_i32_0 = arith.constant 0 : i32
    return %arg0, %c0_i32 : i32, i32
  }
  func.func @transform_1(%arg0: i32) -> (i32, i32) {
    %c0_i32 = arith.constant 0 : i32
    %c0_i32_0 = arith.constant 0 : i32
    return %arg0, %c0_i32 : i32, i32
  }
  func.func @transform_2(%arg0: i32) -> (i32, i32) {
    %c0_i32 = arith.constant 0 : i32
    %c0_i32_0 = arith.constant 0 : i32
    return %arg0, %c0_i32 : i32, i32
  }
  func.func @transform_3(%arg0: i32) -> (i32, i32) {
    %c0_i32 = arith.constant 0 : i32
    %c0_i32_0 = arith.constant 0 : i32
    return %arg0, %c0_i32 : i32, i32
  }
}

</mosaic_0001>

<llo_original>
// kernel: tpu_custom_call.1
$region0: #{tpu_custom_call.1}
  #allocation0 [shape = 'u32[]', space=smem, size = 0x4, offset = 0x4, fixed_abs, tag = 'smem constant byte address 0x4 - core index']
  #allocation1 [shape = 'u32[144,128]{1,0:T(1,128)}', space=vmem, size = 0x12000, scoped, tag = 'internal scratch']
  %s0 = inlined_call_operand.vmem [shape: f32[16,128], index: 0, kind: input, shape index: {}]
  %s1 = inlined_call_operand.hbm [shape: f32[16,128], index: 1, kind: input, shape index: {}, may-alias: {1,3}]
  %s2 = inlined_call_operand.hbm [shape: f32[16,128], index: 2, kind: output, shape index: {0}]
  %s3 = inlined_call_operand.hbm [shape: f32[16,128], index: 3, kind: output, shape index: {1}, may-alias: {1,3}]
  %4 = xla_tuple %s2, %s3
  %s5 = sld [smem:[#allocation0]]
  $region53: #{tpu_custom_call.1} parent=0
    _
  %s7 = ssub.s32 1, %s5
  %s8 = scalar_select 0, %s7, %s5
  $region1: #{tpu_custom_call.1} parent=0
    #allocation2 [shape = 'u8[8192]{0}', space=vmem, size = 0x2000, scoped, tag = 'input window, operand 1']
    #allocation3 [shape = 's32[2]{0}', space=sflag, size = 0x8, scoped, tag = 'scoped memory for tpu_custom_call.1']
    #allocation4 [shape = 's32[2]{0}', space=sflag, size = 0x8, scoped, tag = 'scoped memory for tpu_custom_call.1']
    #allocation5 [shape = 'u8[8192]{0}', space=vmem, size = 0x2000, scoped, tag = 'output window, operand 0']
    #allocation6 [shape = 'u8[8192]{0}', space=vmem, size = 0x2000, scoped, tag = 'output window, operand 1']
    #allocation7 [shape = 's32[2]{0}', space=sflag, size = 0x8, scoped, tag = 'scoped memory for tpu_custom_call.1']
    %9 = vsyncpa [#allocation3], 0
    %s10 = scalar_lea.sflag [#allocation3], 1
    %11 = vsyncpa %s10, 0
    %12 = vsyncpa [#allocation4], 0
    %s13 = scalar_lea.sflag [#allocation4], 1
    %14 = vsyncpa %s13, 0
    %15 = vsyncpa [#allocation7], 0
    %s16 = scalar_lea.sflag [#allocation7], 1
    %17 = vsyncpa %s16, 0
    loop: start=0, step=1, limit=4
    $region2: #{tpu_custom_call.1} parent=1 // loop_pre_header
      _
    $region3: #{tpu_custom_call.1} parent=1 // loop_header
      %s19 = sphi 0, %s23
      %p20 = scmp.ge.s32.totalorder %s19, 4
      %s29 = sphi 0, %s31
      %s32 = sphi 0, %s29
      %s33 = sphi 0, %s32
      %s49 = sphi 0, %s33
      %s55 = sphi 0, %s57
      %s58 = sphi 0, %s55
      %s59 = sphi 0, %s58
      %s75 = sphi 0, %s59
      %s81 = sphi 0, %s83
      %s84 = sphi 0, %s81
      %s85 = sphi 0, %s84
      %s101 = sphi 0, %s85
      %s107 = sphi 0, %s109
      %s110 = sphi 0, %s107
      %s111 = sphi 0, %s110
      %s127 = sphi 0, %s111
    $region4: #{tpu_custom_call.1} parent=1 // loop_header_branch
      %22 = sbr.rel (%p20) target = $region8
    $region5: #{tpu_custom_call.1} parent=1 // loop_body
      %s24 = ssub.s32 %s19, 1
      %s25 = ssub.s32 %s19, 2
      %s26 = sadd.s32 %s19, 1
      %s27 = ssub.s32 %s19, %s26
      %p28 = scmp.eq.s32.totalorder %s27, 0
      %s30 = sadd.s32 %s29, 1
      %s31 = scalar_select %p28, %s29, %s30
      %p34 = pneg %p28
      %p35 = scmp.eq.s32.totalorder %s19, 1
      %p36 = por %p34, %p35
      %p37 = scmp.ne.s32.totalorder %s29, %s32
      %p38 = scmp.eq.s32.totalorder %s19, 0
      %p39 = por %p37, %p38
      %p40 = scmp.ne.s32.totalorder %s29, %s32
      %p41 = scmp.eq.s32.totalorder %s24, 1
      %p42 = por %p40, %p41
      %p43 = scmp.ne.s32.totalorder %s32, %s33
      %p44 = scmp.eq.s32.totalorder %s24, 0
      %p45 = por %p43, %p44
      %p46 = scmp.ne.s32.totalorder %s32, %s33
      %p47 = scmp.eq.s32.totalorder %s25, 1
      %p48 = por %p46, %p47
      %p50 = scmp.ne.s32.totalorder %s33, %s49
      %p51 = scmp.eq.s32.totalorder %s25, 0
      %p52 = por %p50, %p51
      %s53 = ssub.s32 %s19, %s26
      %p54 = scmp.eq.s32.totalorder %s53, 0
      %s56 = sadd.s32 %s55, 1
      %s57 = scalar_select %p54, %s55, %s56
      %p60 = pneg %p54
      %p61 = scmp.eq.s32.totalorder %s19, 1
      %p62 = por %p60, %p61
      %p63 = scmp.ne.s32.totalorder %s55, %s58
      %p64 = scmp.eq.s32.totalorder %s19, 0
      %p65 = por %p63, %p64
      %p66 = scmp.ne.s32.totalorder %s55, %s58
      %p67 = scmp.eq.s32.totalorder %s24, 1
      %p68 = por %p66, %p67
      %p69 = scmp.ne.s32.totalorder %s58, %s59
      %p70 = scmp.eq.s32.totalorder %s24, 0
      %p71 = por %p69, %p70
      %p72 = scmp.ne.s32.totalorder %s58, %s59
      %p73 = scmp.eq.s32.totalorder %s25, 1
      %p74 = por %p72, %p73
      %p76 = scmp.ne.s32.totalorder %s59, %s75
      %p77 = scmp.eq.s32.totalorder %s25, 0
      %p78 = por %p76, %p77
      %s79 = ssub.s32 %s19, %s26
      %p80 = scmp.eq.s32.totalorder %s79, 0
      %s82 = sadd.s32 %s81, 1
      %s83 = scalar_select %p80, %s81, %s82
      %p86 = pneg %p80
      %p87 = scmp.eq.s32.totalorder %s19, 1
      %p88 = por %p86, %p87
      %p89 = scmp.ne.s32.totalorder %s81, %s84
      %p90 = scmp.eq.s32.totalorder %s19, 0
      %p91 = por %p89, %p90
      %p92 = scmp.ne.s32.totalorder %s81, %s84
      %p93 = scmp.eq.s32.totalorder %s24, 1
      %p94 = por %p92, %p93
      %p95 = scmp.ne.s32.totalorder %s84, %s85
      %p96 = scmp.eq.s32.totalorder %s24, 0
      %p97 = por %p95, %p96
      %p98 = scmp.ne.s32.totalorder %s84, %s85
      %p99 = scmp.eq.s32.totalorder %s25, 1
      %p100 = por %p98, %p99
      %p102 = scmp.ne.s32.totalorder %s85, %s101
      %p103 = scmp.eq.s32.totalorder %s25, 0
      %p104 = por %p102, %p103
      %s105 = ssub.s32 %s19, %s26
      %p106 = scmp.eq.s32.totalorder %s105, 0
      %s108 = sadd.s32 %s107, 1
      %s109 = scalar_select %p106, %s107, %s108
      %p112 = pneg %p106
      %p113 = scmp.eq.s32.totalorder %s19, 1
      %p114 = por %p112, %p113
      %p115 = scmp.ne.s32.totalorder %s107, %s110
      %p116 = scmp.eq.s32.totalorder %s19, 0
      %p117 = por %p115, %p116
      %p118 = scmp.ne.s32.totalorder %s107, %s110
      %p119 = scmp.eq.s32.totalorder %s24, 1
      %p120 = por %p118, %p119
      %p121 = scmp.ne.s32.totalorder %s110, %s111
      %p122 = scmp.eq.s32.totalorder %s24, 0
      %p123 = por %p121, %p122
      %p124 = scmp.ne.s32.totalorder %s110, %s111
      %p125 = scmp.eq.s32.totalorder %s25, 1
      %p126 = por %p124, %p125
      %p128 = scmp.ne.s32.totalorder %s111, %s127
      %p129 = scmp.eq.s32.totalorder %s25, 0
      %p130 = por %p128, %p129
      %p131 = scmp.le.s32.totalorder 1, %s19
      %p132 = scmp.lt.s32.totalorder %s19, 3
      %p133 = pnand %p131, %p132
      %p134 = pneg %p133
      // Predicated region
      $region9: #{tpu_custom_call.1} parent=5 // pred_check
        _
      $region10: #{tpu_custom_call.1} parent=5 // pred_check_branch
        %136 = sbr.rel (%p133) target = $region12
      $region11: #{tpu_custom_call.1} parent=5 // pred_region
        %s137 = ssub.s32 %s19, 1
      $region12: #{tpu_custom_call.1} parent=5 // pred_fallthru
        _
      %p138 = scmp.lt.s32.totalorder %s19, 2
      // Predicated region
      $region13: #{tpu_custom_call.1} parent=5 // pred_check
        %p139 = pneg %p138
      $region14: #{tpu_custom_call.1} parent=5 // pred_check_branch
        %141 = sbr.rel (%p139) target = $region16
      $region15: #{tpu_custom_call.1} parent=5 // pred_region
        // Predicated region
        $region17: #{tpu_custom_call.1} parent=15 // pred_check
          %p142 = pneg %p39
        $region18: #{tpu_custom_call.1} parent=15 // pred_check_branch
          %144 = sbr.rel (%p142) target = $region20
        $region19: #{tpu_custom_call.1} parent=15 // pred_region
          %p145 = scmp.lt.s32.totalorder %s19, 1
          %s146 = scalar_select %p145, %s19, 1
          %s147 = smul.addr %s146, 8
          %s148 = scalar_lea.vmem %s0, %s147
        $region20: #{tpu_custom_call.1} parent=15 // pred_fallthru
          _
        // Predicated region
        $region21: #{tpu_custom_call.1} parent=15 // pred_check
          %p149 = pneg %p65
        $region22: #{tpu_custom_call.1} parent=15 // pred_check_branch
          %151 = sbr.rel (%p149) target = $region24
        $region23: #{tpu_custom_call.1} parent=15 // pred_region
          %s152 = sand.u32 %s55, 1
          %s153 = scalar_lea.sflag [#allocation3], %s152
          %s154 = sand.u32 %s55, 1
          %s155 = smul.addr %s154, 8
          %s156 = scalar_lea.vmem [#allocation2], %s155
          %s158 = ssub.s32 128, 128
          %159 = vsyncadd %s153, %s158
          %s160 = smul.addr %s19, 128
          %s161 = scalar_lea.hbm %s1, %s160
          %s163 = sshll.u32 %s156, 4
          %s164 = int_to_ptr.vmem [resolvable:$true] %s163
          %166 = dma.hbm_to_vmem [thread:$0]  %s161, 128, %s164, %s153
        $region24: #{tpu_custom_call.1} parent=15 // pred_fallthru
          _
      $region16: #{tpu_custom_call.1} parent=5 // pred_fallthru
        _
      %p167 = scmp.le.s32.totalorder 1, %s19
      %p168 = scmp.lt.s32.totalorder %s19, 3
      %p169 = pnand %p167, %p168
      %p170 = pneg %p169
      // Predicated region
      $region25: #{tpu_custom_call.1} parent=5 // pred_check
        _
      $region26: #{tpu_custom_call.1} parent=5 // pred_check_branch
        %172 = sbr.rel (%p169) target = $region28
      $region27: #{tpu_custom_call.1} parent=5 // pred_region
        %s173 = ssub.s32 %s19, 1
        %s174 = sand.u32 %s58, 1
        %s175 = scalar_lea.sflag [#allocation3], %s174
        %s176 = sand.u32 %s58, 1
        %s177 = smul.addr %s176, 8
        %s178 = scalar_lea.vmem [#allocation2], %s177
        // Predicated region
        $region29: #{tpu_custom_call.1} parent=27 // pred_check
          %p179 = pneg %p71
        $region30: #{tpu_custom_call.1} parent=27 // pred_check_branch
          %181 = sbr.rel (%p179) target = $region32
        $region31: #{tpu_custom_call.1} parent=27 // pred_region
          %182 = dma.done %s175, 128
        $region32: #{tpu_custom_call.1} parent=27 // pred_fallthru
          _
        %p183 = scmp.lt.s32.totalorder %s24, 1
        %s184 = scalar_select %p183, %s24, 1
        %s185 = smul.addr %s184, 8
        %s186 = scalar_lea.vmem %s0, %s185
        %p187 = pneg %p45
        %p188 = pneg %p42
        %s189 = sand.u32 %s58, 1
        %s190 = scalar_lea.sflag [#allocation3], %s189
        %s191 = sand.u32 %s58, 1
        %s192 = smul.addr %s191, 8
        %s193 = scalar_lea.vmem [#allocation2], %s192
        %p194 = pneg %p71
        %p195 = pneg %p68
        %p196 = pneg %p97
        %p197 = pneg %p94
        %s198 = sand.u32 %s84, 1
        %s199 = scalar_lea.sflag [#allocation4], %s198
        %s200 = sand.u32 %s84, 1
        %s201 = smul.addr %s200, 8
        %s202 = scalar_lea.vmem [#allocation5], %s201
        %p203 = pneg %p123
        %p204 = pneg %p120
        %s205 = sand.u32 %s110, 1
        %s206 = scalar_lea.sflag [#allocation7], %s205
        %s207 = sand.u32 %s110, 1
        %s208 = smul.addr %s207, 8
        %s209 = scalar_lea.vmem [#allocation6], %s208
        %p210 = scmp.lt.s32.totalorder %s24, 1
        %s211 = scalar_select %p210, %s24, 1
        %s212 = smul.addr %s211, 8
        %s213 = scalar_lea.vmem %s0, %s212
        %v214 = vld [vmem:[%s178] sm:$0xff]
        %v215 = vmul.f32 %v214, 0.5
        %v216 = vld [vmem:[%s213] sm:$0xff]
        %v217 = vadd.f32 %v215, %v216
        %vm218 = vcmp.ge.f32.partialorder %v217, 1.0
        %v219 = vsel %vm218, 1, 0
        %v220 = vcvt.s32.f32 %v219
        %221 = vst [vmem:[%s202] sm:$0xff] %v220
        %v222 = vsub.f32 1.0, %v220
        %v223 = vmul.f32 %v217, %v222
        %224 = vst [vmem:[%s209] sm:$0xff] %v223
        %s225 = sand.u32 %s84, 1
        %s226 = scalar_lea.sflag [#allocation4], %s225
        %s227 = sand.u32 %s84, 1
        %s228 = smul.addr %s227, 8
        %s229 = scalar_lea.vmem [#allocation5], %s228
        %s230 = sand.u32 %s110, 1
        %s231 = scalar_lea.sflag [#allocation7], %s230
        %s232 = sand.u32 %s110, 1
        %s233 = smul.addr %s232, 8
        %s234 = scalar_lea.vmem [#allocation6], %s233
        // Predicated region
        $region33: #{tpu_custom_call.1} parent=27 // pred_check
          %p235 = pneg %p94
        $region34: #{tpu_custom_call.1} parent=27 // pred_check_branch
          %237 = sbr.rel (%p235) target = $region36
        $region35: #{tpu_custom_call.1} parent=27 // pred_region
          %s239 = ssub.s32 128, 128
          %240 = vsyncadd %s226, %s239
          %s241 = smul.addr %s24, 128
          %s242 = scalar_lea.hbm %s2, %s241
          %s244 = sshll.u32 %s229, 4
          %s245 = int_to_ptr.vmem [resolvable:$true] %s244
          %247 = dma.vmem_to_hbm [thread:$0]  %s245, 128, %s242, %s226
        $region36: #{tpu_custom_call.1} parent=27 // pred_fallthru
          _
        // Predicated region
        $region37: #{tpu_custom_call.1} parent=27 // pred_check
          %p248 = pneg %p120
        $region38: #{tpu_custom_call.1} parent=27 // pred_check_branch
          %250 = sbr.rel (%p248) target = $region40
        $region39: #{tpu_custom_call.1} parent=27 // pred_region
          %s252 = ssub.s32 128, 128
          %253 = vsyncadd %s231, %s252
          %s254 = smul.addr %s24, 128
          %s255 = scalar_lea.hbm %s3, %s254
          %s257 = sshll.u32 %s234, 4
          %s258 = int_to_ptr.vmem [resolvable:$true] %s257
          %260 = dma.vmem_to_hbm [thread:$0]  %s258, 128, %s255, %s231
        $region40: #{tpu_custom_call.1} parent=27 // pred_fallthru
          _
      $region28: #{tpu_custom_call.1} parent=5 // pred_fallthru
        _
      %p261 = scmp.le.s32.totalorder 2, %s19
      // Predicated region
      $region41: #{tpu_custom_call.1} parent=5 // pred_check
        %p262 = pneg %p261
      $region42: #{tpu_custom_call.1} parent=5 // pred_check_branch
        %264 = sbr.rel (%p262) target = $region44
      $region43: #{tpu_custom_call.1} parent=5 // pred_region
        %s265 = ssub.s32 %s19, 2
        // Predicated region
        $region45: #{tpu_custom_call.1} parent=43 // pred_check
          %p266 = pneg %p100
        $region46: #{tpu_custom_call.1} parent=43 // pred_check_branch
          %268 = sbr.rel (%p266) target = $region48
        $region47: #{tpu_custom_call.1} parent=43 // pred_region
          %s269 = sand.u32 %s85, 1
          %s270 = scalar_lea.sflag [#allocation4], %s269
          %s271 = sand.u32 %s85, 1
          %s272 = smul.addr %s271, 8
          %s273 = scalar_lea.vmem [#allocation5], %s272
          %274 = dma.done %s270, 128
        $region48: #{tpu_custom_call.1} parent=43 // pred_fallthru
          _
        // Predicated region
        $region49: #{tpu_custom_call.1} parent=43 // pred_check
          %p275 = pneg %p126
        $region50: #{tpu_custom_call.1} parent=43 // pred_check_branch
          %277 = sbr.rel (%p275) target = $region52
        $region51: #{tpu_custom_call.1} parent=43 // pred_region
          %s278 = sand.u32 %s111, 1
          %s279 = scalar_lea.sflag [#allocation7], %s278
          %s280 = sand.u32 %s111, 1
          %s281 = smul.addr %s280, 8
          %s282 = scalar_lea.vmem [#allocation6], %s281
          %283 = dma.done %s279, 128
        $region52: #{tpu_custom_call.1} parent=43 // pred_fallthru
          _
      $region44: #{tpu_custom_call.1} parent=5 // pred_fallthru
        _
    $region6: #{tpu_custom_call.1} parent=1 // loop_footer
      %s23 = sadd.s32 1, %s19
    $region7: #{tpu_custom_call.1} parent=1 // loop_footer_branch
      %18 = sbr.rel target = $region3
    $region8: #{tpu_custom_call.1} parent=1 // loop_exit
      _
    %284 = vsyncpa [#allocation3], 1
    %s285 = scalar_lea.sflag [#allocation3], 1
    %286 = vsyncpa %s285, 1
    %287 = vsyncpa [#allocation4], 1
    %s288 = scalar_lea.sflag [#allocation4], 1
    %289 = vsyncpa %s288, 1
    %290 = vsyncpa [#allocation7], 1
    %s291 = scalar_lea.sflag [#allocation7], 1
    %292 = vsyncpa %s291, 1

</llo_original>
